<compile_context>
chip_gen: v5e
topology: v5e:2x2
jax: 0.10.0
libtpu: 0.0.40
codegen_flags: <defaults>
</compile_context>

<pallas_src>
import functools
import numpy as np

import jax
import jax.numpy as jnp
from jax.experimental import pallas as pl
from jax.experimental.pallas import tpu as pltpu

LANE = 128


# --------------------------------------------------------------------------
# Kernel A: conv (+abs) and per-batch channel sum / sum-of-squares.
# One grid step = one batch element.  Per output row h:
#   row[w, co] = sum_kh  xw[h+kh, w, :] @ W2[kh, :, co]
# where xw has (kw, ci) fused on the lane dim (k*Cin wide) and W2 is the
# matching [k, k*Cin, Cpad] weight slab (Cpad = 128-lane padded Cout).
# Stats are accumulated from the f32 accumulator; y is stored bf16.
# --------------------------------------------------------------------------
def _conv_stats_kernel(x_ref, w_ref, y_ref, s1_ref, s2_ref, *,
                       hc, ksize, abs_flag):
    wc = y_ref.shape[1]
    cpad = y_ref.shape[2]

    def row_body(h, carry):
        s1, s2 = carry
        acc = jnp.zeros((wc, cpad), jnp.float32)
        for kh in range(ksize):                       # k shifted matmuls
            acc = acc + jnp.dot(x_ref[h + kh], w_ref[kh],
                                preferred_element_type=jnp.float32)
        if abs_flag:
            acc = jnp.abs(acc)
        y_ref[h] = acc.astype(y_ref.dtype)            # lane-dense bf16 store
        s1 = s1 + jnp.sum(acc, axis=0, keepdims=True)
        s2 = s2 + jnp.sum(acc * acc, axis=0, keepdims=True)
        return s1, s2

    zero = jnp.zeros((1, cpad), jnp.float32)
    s1, s2 = jax.lax.fori_loop(0, hc, row_body, (zero, zero))
    s1_ref[...] = s1
    s2_ref[...] = s2


# --------------------------------------------------------------------------
# Kernel B (fused): BatchNorm affine + activation + H-pool + W-pool.
#   * y block is the lane-dense [Hc, Wc*Cpad] slab of one batch element.
#   * H-pool: one wide MXU matmul  PR[Hp,Hc] @ z[Hc, Wc*Cpad].
#   * W-pool: per pooled column wo, sum the (<=5) static 128-aligned lane
#     blocks t[:, w*Cpad:(w+1)*Cpad] on the VPU and scale by 1/25 (f32).
#   * Output written as full (Hp, Cpad) tiles into a [Wp, Hp, Cpad] block.
# --------------------------------------------------------------------------
def _bn_act_pool_kernel(y_ref, scale_ref, shift_ref, pr_ref, o_ref, *,
                        activation, wc, wp, cpad):
    z = y_ref[...].astype(jnp.float32) * scale_ref[...] + shift_ref[...]
    if activation == "tanh":
        z = jnp.tanh(z)
    else:
        z = jnp.maximum(z, 0.0)
    t = jnp.dot(pr_ref[...], z.astype(jnp.bfloat16),
                preferred_element_type=jnp.float32)        # [Hp, Wc*Cpad]
    for wo in range(wp):                                   # static small loop
        acc = None
        for dw in range(-2, 3):
            w = 2 * wo + dw
            if 0 <= w < wc:
                blk = t[:, w * cpad:(w + 1) * cpad]        # [Hp, Cpad]
                acc = blk if acc is None else acc + blk
        o_ref[wo] = acc * (1.0 / 25.0)                     # AvgPool 1/25, f32


def _hpool_matrix(hc):
    """H half of separable AvgPool2d(5, stride=2, pad=2, count_include_pad)."""
    hp = (hc + 4 - 5) // 2 + 1
    pr = np.zeros((hp, hc), np.float32)
    for ho in range(hp):
        for dh in range(-2, 3):
            h = 2 * ho + dh
            if 0 <= h < hc:
                pr[ho, h] = 1.0            # 1/25 applied in f32 after W-pool
    return pr, hp


def conv_block_forward(x_nchw, weight, gamma, beta, *, kernel_size,
                       activation="relu", abs_flag=False, eps=1e-5):
    N, Cin, H, W = x_nchw.shape
    Cout = weight.shape[0]
    k = kernel_size
    pad = 2 if k == 5 else 0
    Cpad = ((Cout + LANE - 1) // LANE) * LANE

    Hc = H + 2 * pad - k + 1
    Wc = W + 2 * pad - k + 1
    Hin_p = H + 2 * pad
    KCin = k * Cin

    # ---- wrapper glue: NCHW -> NHWC, pad, kw-shifted bf16 input (k-fold) ----
    x = jnp.transpose(x_nchw, (0, 2, 3, 1))
    xp = jnp.pad(x, ((0, 0), (pad, pad), (pad, pad), (0, 0)))
    xw = jnp.concatenate([xp[:, :, kw:kw + Wc, :] for kw in range(k)], axis=-1)
    xw = xw.astype(jnp.bfloat16)                              # [N,Hin_p,Wc,k*Cin]

    # weights [Cout,Cin,kh,kw] -> [kh, kw*Cin, Cpad], zero-padded channels.
    w2 = jnp.transpose(weight, (2, 3, 1, 0)).reshape(k, KCin, Cout)
    w2 = jnp.pad(w2, ((0, 0), (0, 0), (0, Cpad - Cout))).astype(jnp.bfloat16)

    pr_np, Hp = _hpool_matrix(Hc)
    Wp = (Wc + 4 - 5) // 2 + 1
    pr = jnp.asarray(pr_np, jnp.bfloat16)

    cparams = pltpu.CompilerParams(dimension_semantics=("parallel",),
                                   vmem_limit_bytes=32 * 1024 * 1024)

    # ---- kernel A: conv (+abs) + per-batch channel sum / sum-of-squares ----
    # TODO(synk): for large H the per-batch row loop could become an extra
    # "arbitrary" grid axis over row tiles to keep VMEM independent of height.
    cost_a = pl.CostEstimate(
        flops=2 * N * Hc * k * Wc * KCin * Cpad, transcendentals=0,
        bytes_accessed=xw.size * 2 + w2.size * 2
        + N * Hc * Wc * Cpad * 2 + 2 * N * Cpad * 4)
    kern_a = functools.partial(_conv_stats_kernel, hc=Hc, ksize=k,
                               abs_flag=abs_flag)
    y, s1, s2 = pl.pallas_call(
        kern_a,
        grid=(N,),
        in_specs=[
            pl.BlockSpec((None, Hin_p, Wc, KCin), lambda n: (n, 0, 0, 0)),
            pl.BlockSpec((k, KCin, Cpad), lambda n: (0, 0, 0)),
        ],
        out_specs=(
            pl.BlockSpec((None, Hc, Wc, Cpad), lambda n: (n, 0, 0, 0)),
            pl.BlockSpec((None, 1, Cpad), lambda n: (n, 0, 0)),
            pl.BlockSpec((None, 1, Cpad), lambda n: (n, 0, 0)),
        ),
        out_shape=(
            jax.ShapeDtypeStruct((N, Hc, Wc, Cpad), jnp.bfloat16),
            jax.ShapeDtypeStruct((N, 1, Cpad), jnp.float32),
            jax.ShapeDtypeStruct((N, 1, Cpad), jnp.float32),
        ),
        compiler_params=cparams,
        cost_estimate=cost_a,
    )(xw, w2)

    # ---- BN batch stats (single pass): mean, var = E[x^2]-mean^2 (clamped) --
    count = N * Hc * Wc
    mean = jnp.sum(s1, axis=(0, 1)) / count
    var = jnp.maximum(jnp.sum(s2, axis=(0, 1)) / count - mean * mean, 0.0)
    gamma_p = jnp.pad(gamma.astype(jnp.float32), (0, Cpad - Cout))
    beta_p = jnp.pad(beta.astype(jnp.float32), (0, Cpad - Cout))
    scale = gamma_p * jax.lax.rsqrt(var + eps)     # padded channels: scale = 0
    shift = beta_p - mean * scale                  # padded channels: shift = 0
    WCp = Wc * Cpad
    scale_t = jnp.tile(scale.reshape(1, Cpad), (1, Wc))       # [1, Wc*Cpad]
    shift_t = jnp.tile(shift.reshape(1, Cpad), (1, Wc))

    # ---- kernel B (fused): normalize + activation + H-pool + W-pool --------
    y2 = y.reshape(N, Hc, WCp)                     # free metadata reshape (HBM)
    cost_b = pl.CostEstimate(
        flops=2 * N * Hp * Hc * WCp + 3 * N * Hc * WCp
        + 5 * N * Wp * Hp * Cpad,
        transcendentals=(N * Hc * WCp if activation == "tanh" else 0),
        bytes_accessed=N * Hc * WCp * 2 + 2 * WCp * 4
        + pr.size * 2 + N * Wp * Hp * Cpad * 4)
    kern_b = functools.partial(_bn_act_pool_kernel, activation=activation,
                               wc=Wc, wp=Wp, cpad=Cpad)
    out_p = pl.pallas_call(
        kern_b,
        grid=(N,),
        in_specs=[
            pl.BlockSpec((None, Hc, WCp), lambda n: (n, 0, 0)),
            pl.BlockSpec((1, WCp), lambda n: (0, 0)),
            pl.BlockSpec((1, WCp), lambda n: (0, 0)),
            pl.BlockSpec((Hp, Hc), lambda n: (0, 0)),
        ],
        out_specs=pl.BlockSpec((None, Wp, Hp, Cpad), lambda n: (n, 0, 0, 0)),
        out_shape=jax.ShapeDtypeStruct((N, Wp, Hp, Cpad), jnp.float32),
        compiler_params=cparams,
        cost_estimate=cost_b,
    )(y2, scale_t, shift_t, pr)

    # slice padded channels, (N, Wp, Hp, C) -> PyTorch NCHW (N, C, Hp, Wp).
    return jnp.transpose(out_p[..., :Cout], (0, 3, 2, 1))


def conv_block_reference(x_nchw, weight, gamma, beta, *,
                         kernel_size, activation="relu", abs_flag=False):
    """Pure-JAX f32 reference of the PyTorch forward pass (for verification)."""
    pad = 2 if kernel_size == 5 else 0
    conv = jax.lax.conv_general_dilated(
        x_nchw, weight, window_strides=(1, 1),
        padding=[(pad, pad), (pad, pad)],
        dimension_numbers=("NCHW", "OIHW", "NCHW"))
    if abs_flag:
        conv = jnp.abs(conv)
    mean = conv.mean(axis=(0, 2, 3), keepdims=True)
    var = ((conv - mean) ** 2).mean(axis=(0, 2, 3), keepdims=True)
    y = (conv - mean) / jnp.sqrt(var + 1e-5)
    y = y * gamma.reshape(1, -1, 1, 1) + beta.reshape(1, -1, 1, 1)
    y = jnp.tanh(y) if activation == "tanh" else jnp.maximum(y, 0.0)
    yp = jnp.pad(y, ((0, 0), (0, 0), (2, 2), (2, 2)))
    s = jax.lax.reduce_window(yp, 0.0, jax.lax.add,
                              (1, 1, 5, 5), (1, 1, 2, 2), "VALID")
    return s / 25.0
    # TODO(synk): BatchNorm running-stats update is a training side-effect with
    # no influence on the forward output, so it is intentionally not modeled.


if __name__ == "__main__":
    key = jax.random.PRNGKey(0)
    k_x, k_w, k_g, k_b = jax.random.split(key, 4)

    N, Cin, Cout, H, W, ksize = 2, 4, 8, 16, 16, 5
    x = jax.random.normal(k_x, (N, Cin, H, W), jnp.float32)
    weight = jax.random.normal(k_w, (Cout, Cin, ksize, ksize), jnp.float32) * 0.1
    gamma = 1.0 + 0.1 * jax.random.normal(k_g, (Cout,), jnp.float32)
    beta = 0.1 * jax.random.normal(k_b, (Cout,), jnp.float32)

    ok = True
    for activation, abs_flag in (("relu", False), ("tanh", True)):
        out = conv_block_forward(x, weight, gamma, beta,
                                 kernel_size=ksize, activation=activation,
                                 abs_flag=abs_flag)
        out = jax.block_until_ready(out)
        ref = conv_block_reference(x, weight, gamma, beta,
                                   kernel_size=ksize, activation=activation,
                                   abs_flag=abs_flag)
        ref = jax.block_until_ready(ref)
        if out.shape != (N, Cout, H // 2, W // 2):
            ok = False
        # bf16 MXU operands / bf16 intermediate -> looser tolerance vs. f32 ref.
        if not np.allclose(np.asarray(out), np.asarray(ref),
                           atol=5e-2, rtol=5e-2):
            ok = False

    if ok:
        print("KERNEL_OK")
    else:
        raise SystemExit("mismatch vs reference")
</pallas_src>

<mosaic_0001>
module attributes {stable_mosaic.version = 11 : i64} {
  func.func @_conv_stats_kernel(%arg0: i32, %arg1: memref<1x20x16x20xbf16, #tpu.memory_space<vmem>>, %arg2: memref<5x20x128xbf16, #tpu.memory_space<vmem>>, %arg3: memref<1x16x16x128xbf16, #tpu.memory_space<vmem>>, %arg4: memref<1x1x128xf32, #tpu.memory_space<vmem>>, %arg5: memref<1x1x128xf32, #tpu.memory_space<vmem>>) attributes {dimension_semantics = [#tpu.dimension_semantics<parallel>], iteration_bounds = array<i64: 2>, scalar_prefetch = 0 : i64, scratch_operands = 0 : i64, tpu.core_type = #tpu.core_type<tc>, window_params = [{transform_indices = @transform_0, window_bounds = array<i64: 1, 20, 16, 20>}, {pipeline_mode = #tpu.pipeline_mode<synchronous>, transform_indices = @transform_1, window_bounds = array<i64: 5, 20, 128>}, {transform_indices = @transform_2, window_bounds = array<i64: 1, 16, 16, 128>}, {transform_indices = @transform_3, window_bounds = array<i64: 1, 1, 128>}, {transform_indices = @transform_4, window_bounds = array<i64: 1, 1, 128>}]} {
    %cst = arith.constant 0.000000e+00 : f32
    %0 = vector.broadcast %cst : f32 to vector<1x128xf32>
    %c0_i32 = arith.constant 0 : i32
    %c16_i32 = arith.constant 16 : i32
    %1 = arith.addi %c0_i32, %c16_i32 : i32
    %c1_i32 = arith.constant 1 : i32
    %2:2 = scf.for %arg6 = %c0_i32 to %1 step %c1_i32 iter_args(%arg7 = %0, %arg8 = %0) -> (vector<1x128xf32>, vector<1x128xf32>)  : i32 {
      %cst_6 = arith.constant 0.000000e+00 : f32
      %9 = vector.broadcast %cst_6 : f32 to vector<16x128xf32>
      %c0_i32_7 = arith.constant 0 : i32
      %10 = arith.addi %arg6, %c0_i32_7 : i32
      %c0_8 = arith.constant 0 : index
      %11 = arith.index_cast %10 : i32 to index
      %c0_9 = arith.constant 0 : index
      %c0_10 = arith.constant 0 : index
      %12 = vector.load %arg1[%c0_8, %11, %c0_9, %c0_10] : memref<1x20x16x20xbf16, #tpu.memory_space<vmem>>, vector<1x1x16x20xbf16>
      %13 = vector.shape_cast %12 : vector<1x1x16x20xbf16> to vector<16x20xbf16>
      %c0_11 = arith.constant 0 : index
      %c0_12 = arith.constant 0 : index
      %c0_13 = arith.constant 0 : index
      %14 = vector.load %arg2[%c0_11, %c0_12, %c0_13] : memref<5x20x128xbf16, #tpu.memory_space<vmem>>, vector<1x20x128xbf16>
      %15 = vector.shape_cast %14 : vector<1x20x128xbf16> to vector<20x128xbf16>
      %cst_14 = arith.constant dense<0.000000e+00> : vector<16x128xf32>
      %16 = tpu.matmul %13, %15, %cst_14 {dimension_numbers = #tpu.dot_dimension_numbers<[1], [0], [0], [1], [0, 0, 1, 1], [], []>} : vector<16x20xbf16>, vector<20x128xbf16>, vector<16x128xf32> -> vector<16x128xf32>
      %17 = arith.addf %9, %16 : vector<16x128xf32>
      %c1_i32_15 = arith.constant 1 : i32
      %18 = arith.addi %arg6, %c1_i32_15 : i32
      %c0_16 = arith.constant 0 : index
      %19 = arith.index_cast %18 : i32 to index
      %c0_17 = arith.constant 0 : index
      %c0_18 = arith.constant 0 : index
      %20 = vector.load %arg1[%c0_16, %19, %c0_17, %c0_18] : memref<1x20x16x20xbf16, #tpu.memory_space<vmem>>, vector<1x1x16x20xbf16>
      %21 = vector.shape_cast %20 : vector<1x1x16x20xbf16> to vector<16x20xbf16>
      %c1 = arith.constant 1 : index
      %c0_19 = arith.constant 0 : index
      %c0_20 = arith.constant 0 : index
      %22 = vector.load %arg2[%c1, %c0_19, %c0_20] : memref<5x20x128xbf16, #tpu.memory_space<vmem>>, vector<1x20x128xbf16>
      %23 = vector.shape_cast %22 : vector<1x20x128xbf16> to vector<20x128xbf16>
      %cst_21 = arith.constant dense<0.000000e+00> : vector<16x128xf32>
      %24 = tpu.matmul %21, %23, %cst_21 {dimension_numbers = #tpu.dot_dimension_numbers<[1], [0], [0], [1], [0, 0, 1, 1], [], []>} : vector<16x20xbf16>, vector<20x128xbf16>, vector<16x128xf32> -> vector<16x128xf32>
      %25 = arith.addf %17, %24 : vector<16x128xf32>
      %c2_i32 = arith.constant 2 : i32
      %26 = arith.addi %arg6, %c2_i32 : i32
      %c0_22 = arith.constant 0 : index
      %27 = arith.index_cast %26 : i32 to index
      %c0_23 = arith.constant 0 : index
      %c0_24 = arith.constant 0 : index
      %28 = vector.load %arg1[%c0_22, %27, %c0_23, %c0_24] : memref<1x20x16x20xbf16, #tpu.memory_space<vmem>>, vector<1x1x16x20xbf16>
      %29 = vector.shape_cast %28 : vector<1x1x16x20xbf16> to vector<16x20xbf16>
      %c2 = arith.constant 2 : index
      %c0_25 = arith.constant 0 : index
      %c0_26 = arith.constant 0 : index
      %30 = vector.load %arg2[%c2, %c0_25, %c0_26] : memref<5x20x128xbf16, #tpu.memory_space<vmem>>, vector<1x20x128xbf16>
      %31 = vector.shape_cast %30 : vector<1x20x128xbf16> to vector<20x128xbf16>
      %cst_27 = arith.constant dense<0.000000e+00> : vector<16x128xf32>
      %32 = tpu.matmul %29, %31, %cst_27 {dimension_numbers = #tpu.dot_dimension_numbers<[1], [0], [0], [1], [0, 0, 1, 1], [], []>} : vector<16x20xbf16>, vector<20x128xbf16>, vector<16x128xf32> -> vector<16x128xf32>
      %33 = arith.addf %25, %32 : vector<16x128xf32>
      %c3_i32 = arith.constant 3 : i32
      %34 = arith.addi %arg6, %c3_i32 : i32
      %c0_28 = arith.constant 0 : index
      %35 = arith.index_cast %34 : i32 to index
      %c0_29 = arith.constant 0 : index
      %c0_30 = arith.constant 0 : index
      %36 = vector.load %arg1[%c0_28, %35, %c0_29, %c0_30] : memref<1x20x16x20xbf16, #tpu.memory_space<vmem>>, vector<1x1x16x20xbf16>
      %37 = vector.shape_cast %36 : vector<1x1x16x20xbf16> to vector<16x20xbf16>
      %c3 = arith.constant 3 : index
      %c0_31 = arith.constant 0 : index
      %c0_32 = arith.constant 0 : index
      %38 = vector.load %arg2[%c3, %c0_31, %c0_32] : memref<5x20x128xbf16, #tpu.memory_space<vmem>>, vector<1x20x128xbf16>
      %39 = vector.shape_cast %38 : vector<1x20x128xbf16> to vector<20x128xbf16>
      %cst_33 = arith.constant dense<0.000000e+00> : vector<16x128xf32>
      %40 = tpu.matmul %37, %39, %cst_33 {dimension_numbers = #tpu.dot_dimension_numbers<[1], [0], [0], [1], [0, 0, 1, 1], [], []>} : vector<16x20xbf16>, vector<20x128xbf16>, vector<16x128xf32> -> vector<16x128xf32>
      %41 = arith.addf %33, %40 : vector<16x128xf32>
      %c4_i32 = arith.constant 4 : i32
      %42 = arith.addi %arg6, %c4_i32 : i32
      %c0_34 = arith.constant 0 : index
      %43 = arith.index_cast %42 : i32 to index
      %c0_35 = arith.constant 0 : index
      %c0_36 = arith.constant 0 : index
      %44 = vector.load %arg1[%c0_34, %43, %c0_35, %c0_36] : memref<1x20x16x20xbf16, #tpu.memory_space<vmem>>, vector<1x1x16x20xbf16>
      %45 = vector.shape_cast %44 : vector<1x1x16x20xbf16> to vector<16x20xbf16>
      %c4 = arith.constant 4 : index
      %c0_37 = arith.constant 0 : index
      %c0_38 = arith.constant 0 : index
      %46 = vector.load %arg2[%c4, %c0_37, %c0_38] : memref<5x20x128xbf16, #tpu.memory_space<vmem>>, vector<1x20x128xbf16>
      %47 = vector.shape_cast %46 : vector<1x20x128xbf16> to vector<20x128xbf16>
      %cst_39 = arith.constant dense<0.000000e+00> : vector<16x128xf32>
      %48 = tpu.matmul %45, %47, %cst_39 {dimension_numbers = #tpu.dot_dimension_numbers<[1], [0], [0], [1], [0, 0, 1, 1], [], []>} : vector<16x20xbf16>, vector<20x128xbf16>, vector<16x128xf32> -> vector<16x128xf32>
      %49 = arith.addf %41, %48 : vector<16x128xf32>
      %50 = arith.truncf %49 : vector<16x128xf32> to vector<16x128xbf16>
      %c0_40 = arith.constant 0 : index
      %51 = arith.index_cast %arg6 : i32 to index
      %c0_41 = arith.constant 0 : index
      %c0_42 = arith.constant 0 : index
      %52 = vector.load %arg3[%c0_40, %51, %c0_41, %c0_42] : memref<1x16x16x128xbf16, #tpu.memory_space<vmem>>, vector<1x1x16x128xbf16>
      %53 = vector.shape_cast %52 : vector<1x1x16x128xbf16> to vector<16x128xbf16>
      %54 = vector.shape_cast %50 : vector<16x128xbf16> to vector<1x1x16x128xbf16>
      tpu.vector_store %arg3[%c0_40, %51, %c0_41, %c0_42], %54 {strides = array<i32>} : memref<1x16x16x128xbf16, #tpu.memory_space<vmem>>, vector<1x1x16x128xbf16>,
      %cst_43 = arith.constant dense<0.000000e+00> : vector<128xf32>
      %55 = vector.multi_reduction <add>, %49, %cst_43 [0] : vector<16x128xf32> to vector<128xf32>
      %56 = vector.shape_cast %55 : vector<128xf32> to vector<1x128xf32>
      %57 = arith.addf %arg7, %56 : vector<1x128xf32>
      %58 = arith.mulf %49, %49 : vector<16x128xf32>
      %cst_44 = arith.constant dense<0.000000e+00> : vector<128xf32>
      %59 = vector.multi_reduction <add>, %58, %cst_44 [0] : vector<16x128xf32> to vector<128xf32>
      %60 = vector.shape_cast %59 : vector<128xf32> to vector<1x128xf32>
      %61 = arith.addf %arg8, %60 : vector<1x128xf32>
      scf.yield %57, %61 : vector<1x128xf32>, vector<1x128xf32>
    }
    %c16_i32_0 = arith.constant 16 : i32
    %c0 = arith.constant 0 : index
    %c0_1 = arith.constant 0 : index
    %c0_2 = arith.constant 0 : index
    %3 = vector.load %arg4[%c0, %c0_1, %c0_2] : memref<1x1x128xf32, #tpu.memory_space<vmem>>, vector<1x1x128xf32>
    %4 = vector.shape_cast %3 : vector<1x1x128xf32> to vector<1x128xf32>
    %5 = vector.shape_cast %2#0 : vector<1x128xf32> to vector<1x1x128xf32>
    tpu.vector_store %arg4[%c0, %c0_1, %c0_2], %5 {strides = array<i32>} : memref<1x1x128xf32, #tpu.memory_space<vmem>>, vector<1x1x128xf32>,
    %c0_3 = arith.constant 0 : index
    %c0_4 = arith.constant 0 : index
    %c0_5 = arith.constant 0 : index
    %6 = vector.load %arg5[%c0_3, %c0_4, %c0_5] : memref<1x1x128xf32, #tpu.memory_space<vmem>>, vector<1x1x128xf32>
    %7 = vector.shape_cast %6 : vector<1x1x128xf32> to vector<1x128xf32>
    %8 = vector.shape_cast %2#1 : vector<1x128xf32> to vector<1x1x128xf32>
    tpu.vector_store %arg5[%c0_3, %c0_4, %c0_5], %8 {strides = array<i32>} : memref<1x1x128xf32, #tpu.memory_space<vmem>>, vector<1x1x128xf32>,
    return
  }
  func.func @transform_0(%arg0: i32) -> (i32, i32, i32, i32) {
    %c0_i32 = arith.constant 0 : i32
    %c0_i32_0 = arith.constant 0 : i32
    %c0_i32_1 = arith.constant 0 : i32
    %c0_i32_2 = arith.constant 0 : i32
    return %arg0, %c0_i32, %c0_i32_0, %c0_i32_1 : i32, i32, i32, i32
  }
  func.func @transform_1(%arg0: i32) -> (i32, i32, i32) {
    %c0_i32 = arith.constant 0 : i32
    %c0_i32_0 = arith.constant 0 : i32
    %c0_i32_1 = arith.constant 0 : i32
    %c0_i32_2 = arith.constant 0 : i32
    return %c0_i32, %c0_i32_0, %c0_i32_1 : i32, i32, i32
  }
  func.func @transform_2(%arg0: i32) -> (i32, i32, i32, i32) {
    %c0_i32 = arith.constant 0 : i32
    %c0_i32_0 = arith.constant 0 : i32
    %c0_i32_1 = arith.constant 0 : i32
    %c0_i32_2 = arith.constant 0 : i32
    return %arg0, %c0_i32, %c0_i32_0, %c0_i32_1 : i32, i32, i32, i32
  }
  func.func @transform_3(%arg0: i32) -> (i32, i32, i32) {
    %c0_i32 = arith.constant 0 : i32
    %c0_i32_0 = arith.constant 0 : i32
    %c0_i32_1 = arith.constant 0 : i32
    return %arg0, %c0_i32, %c0_i32_0 : i32, i32, i32
  }
  func.func @transform_4(%arg0: i32) -> (i32, i32, i32) {
    %c0_i32 = arith.constant 0 : i32
    %c0_i32_0 = arith.constant 0 : i32
    %c0_i32_1 = arith.constant 0 : i32
    return %arg0, %c0_i32, %c0_i32_0 : i32, i32, i32
  }
}

</mosaic_0001>

<llo_original>
// kernel: tpu_custom_call.1
$region0: #{tpu_custom_call.1}
  #allocation0 [shape = 'u32[]', space=smem, size = 0x4, offset = 0x4, fixed_abs, tag = 'smem constant byte address 0x4 - core index']
  #allocation1 [shape = 'u32[72,128]{1,0:T(1,128)}', space=vmem, size = 0x9000, scoped, tag = 'internal scratch']
  %s0 = inlined_call_operand.hbm [shape: bf16[2,20,16,20], index: 0, kind: input, shape index: {}]
  %s1 = inlined_call_operand.hbm [shape: bf16[5,20,128], index: 1, kind: input, shape index: {}]
  %s2 = inlined_call_operand.hbm [shape: bf16[2,16,16,128], index: 2, kind: output, shape index: {0}]
  %s3 = inlined_call_operand.hbm [shape: f32[2,1,128], index: 3, kind: output, shape index: {1}]
  %s4 = inlined_call_operand.hbm [shape: f32[2,1,128], index: 4, kind: output, shape index: {2}]
  %5 = xla_tuple %s2, %s3, %s4
  %s6 = sld [smem:[#allocation0]]
  $region72: #{tpu_custom_call.1} parent=0
    _
  %s8 = ssub.s32 1, %s6
  %s9 = scalar_select 0, %s8, %s6
  $region1: #{tpu_custom_call.1} parent=0
    #allocation2 [shape = 'u8[163840]{0}', space=vmem, size = 0x28000, scoped, tag = 'input window, operand 0']
    #allocation3 [shape = 's32[2]{0}', space=sflag, size = 0x8, scoped, tag = 'scoped memory for tpu_custom_call.1']
    #allocation4 [shape = 's32[2]{0}', space=sflag, size = 0x8, scoped, tag = 'scoped memory for tpu_custom_call.1']
    #allocation5 [shape = 'u8[30720]{0}', space=vmem, size = 0x7800, scoped, tag = 'input window, operand 1, single buffered']
    #allocation6 [shape = 's32[1]{0}', space=sflag, size = 0x4, scoped, tag = 'scoped memory for tpu_custom_call.1']
    #allocation7 [shape = 'u8[131072]{0}', space=vmem, size = 0x20000, scoped, tag = 'output window, operand 0']
    #allocation8 [shape = 'u8[1024]{0}', space=vmem, size = 0x400, scoped, tag = 'output window, operand 1']
    #allocation9 [shape = 's32[2]{0}', space=sflag, size = 0x8, scoped, tag = 'scoped memory for tpu_custom_call.1']
    #allocation10 [shape = 'u8[1024]{0}', space=vmem, size = 0x400, scoped, tag = 'output window, operand 2']
    %10 = vsyncpa [#allocation3], 0
    %s11 = scalar_lea.sflag [#allocation3], 1
    %12 = vsyncpa %s11, 0
    %13 = vsyncpa [#allocation6], 0
    %14 = vsyncpa [#allocation4], 0
    %s15 = scalar_lea.sflag [#allocation4], 1
    %16 = vsyncpa %s15, 0
    %17 = vsyncpa [#allocation9], 0
    %s18 = scalar_lea.sflag [#allocation9], 1
    %19 = vsyncpa %s18, 0
    loop: start=0, step=1, limit=4
    $region2: #{tpu_custom_call.1} parent=1 // loop_pre_header
      _
    $region3: #{tpu_custom_call.1} parent=1 // loop_header
      %s21 = sphi 0, %s25
      %p22 = scmp.ge.s32.totalorder %s21, 4
      %s31 = sphi 0, %s33
      %s34 = sphi 0, %s31
      %s35 = sphi 0, %s34
      %s51 = sphi 0, %s35
      %s55 = sphi 0, %s55
      %s57 = sphi 0, %s55
      %s58 = sphi 0, %s57
      %s72 = sphi 0, %s58
      %s78 = sphi 0, %s80
      %s81 = sphi 0, %s78
      %s82 = sphi 0, %s81
      %s98 = sphi 0, %s82
      %s104 = sphi 0, %s106
      %s107 = sphi 0, %s104
      %s108 = sphi 0, %s107
      %s124 = sphi 0, %s108
      %s130 = sphi 0, %s132
      %s133 = sphi 0, %s130
      %s134 = sphi 0, %s133
      %s150 = sphi 0, %s134
    $region4: #{tpu_custom_call.1} parent=1 // loop_header_branch
      %24 = sbr.rel (%p22) target = $region8
    $region5: #{tpu_custom_call.1} parent=1 // loop_body
      %s26 = ssub.s32 %s21, 1
      %s27 = ssub.s32 %s21, 2
      %s28 = sadd.s32 %s21, 1
      %s29 = ssub.s32 %s21, %s28
      %p30 = scmp.eq.s32.totalorder %s29, 0
      %s32 = sadd.s32 %s31, 1
      %s33 = scalar_select %p30, %s31, %s32
      %p36 = pneg %p30
      %p37 = scmp.eq.s32.totalorder %s21, 1
      %p38 = por %p36, %p37
      %p39 = scmp.ne.s32.totalorder %s31, %s34
      %p40 = scmp.eq.s32.totalorder %s21, 0
      %p41 = por %p39, %p40
      %p42 = scmp.ne.s32.totalorder %s31, %s34
      %p43 = scmp.eq.s32.totalorder %s26, 1
      %p44 = por %p42, %p43
      %p45 = scmp.ne.s32.totalorder %s34, %s35
      %p46 = scmp.eq.s32.totalorder %s26, 0
      %p47 = por %p45, %p46
      %p48 = scmp.ne.s32.totalorder %s34, %s35
      %p49 = scmp.eq.s32.totalorder %s27, 1
      %p50 = por %p48, %p49
      %p52 = scmp.ne.s32.totalorder %s35, %s51
      %p53 = scmp.eq.s32.totalorder %s27, 0
      %p54 = por %p52, %p53
      %s56 = sadd.s32 %s55, 1
      %p59 = scmp.eq.s32.totalorder %s21, 1
      %p60 = scmp.ne.s32.totalorder %s55, %s57
      %p61 = scmp.eq.s32.totalorder %s21, 0
      %p62 = por %p60, %p61
      %p63 = scmp.ne.s32.totalorder %s55, %s57
      %p64 = scmp.eq.s32.totalorder %s26, 1
      %p65 = por %p63, %p64
      %p66 = scmp.ne.s32.totalorder %s57, %s58
      %p67 = scmp.eq.s32.totalorder %s26, 0
      %p68 = por %p66, %p67
      %p69 = scmp.ne.s32.totalorder %s57, %s58
      %p70 = scmp.eq.s32.totalorder %s27, 1
      %p71 = por %p69, %p70
      %p73 = scmp.ne.s32.totalorder %s58, %s72
      %p74 = scmp.eq.s32.totalorder %s27, 0
      %p75 = por %p73, %p74
      %s76 = ssub.s32 %s21, %s28
      %p77 = scmp.eq.s32.totalorder %s76, 0
      %s79 = sadd.s32 %s78, 1
      %s80 = scalar_select %p77, %s78, %s79
      %p83 = pneg %p77
      %p84 = scmp.eq.s32.totalorder %s21, 1
      %p85 = por %p83, %p84
      %p86 = scmp.ne.s32.totalorder %s78, %s81
      %p87 = scmp.eq.s32.totalorder %s21, 0
      %p88 = por %p86, %p87
      %p89 = scmp.ne.s32.totalorder %s78, %s81
      %p90 = scmp.eq.s32.totalorder %s26, 1
      %p91 = por %p89, %p90
      %p92 = scmp.ne.s32.totalorder %s81, %s82
      %p93 = scmp.eq.s32.totalorder %s26, 0
      %p94 = por %p92, %p93
      %p95 = scmp.ne.s32.totalorder %s81, %s82
      %p96 = scmp.eq.s32.totalorder %s27, 1
      %p97 = por %p95, %p96
      %p99 = scmp.ne.s32.totalorder %s82, %s98
      %p100 = scmp.eq.s32.totalorder %s27, 0
      %p101 = por %p99, %p100
      %s102 = ssub.s32 %s21, %s28
      %p103 = scmp.eq.s32.totalorder %s102, 0
      %s105 = sadd.s32 %s104, 1
      %s106 = scalar_select %p103, %s104, %s105
      %p109 = pneg %p103
      %p110 = scmp.eq.s32.totalorder %s21, 1
      %p111 = por %p109, %p110
      %p112 = scmp.ne.s32.totalorder %s104, %s107
      %p113 = scmp.eq.s32.totalorder %s21, 0
      %p114 = por %p112, %p113
      %p115 = scmp.ne.s32.totalorder %s104, %s107
      %p116 = scmp.eq.s32.totalorder %s26, 1
      %p117 = por %p115, %p116
      %p118 = scmp.ne.s32.totalorder %s107, %s108
      %p119 = scmp.eq.s32.totalorder %s26, 0
      %p120 = por %p118, %p119
      %p121 = scmp.ne.s32.totalorder %s107, %s108
      %p122 = scmp.eq.s32.totalorder %s27, 1
      %p123 = por %p121, %p122
      %p125 = scmp.ne.s32.totalorder %s108, %s124
      %p126 = scmp.eq.s32.totalorder %s27, 0
      %p127 = por %p125, %p126
      %s128 = ssub.s32 %s21, %s28
      %p129 = scmp.eq.s32.totalorder %s128, 0
      %s131 = sadd.s32 %s130, 1
      %s132 = scalar_select %p129, %s130, %s131
      %p135 = pneg %p129
      %p136 = scmp.eq.s32.totalorder %s21, 1
      %p137 = por %p135, %p136
      %p138 = scmp.ne.s32.totalorder %s130, %s133
      %p139 = scmp.eq.s32.totalorder %s21, 0
      %p140 = por %p138, %p139
      %p141 = scmp.ne.s32.totalorder %s130, %s133
      %p142 = scmp.eq.s32.totalorder %s26, 1
      %p143 = por %p141, %p142
      %p144 = scmp.ne.s32.totalorder %s133, %s134
      %p145 = scmp.eq.s32.totalorder %s26, 0
      %p146 = por %p144, %p145
      %p147 = scmp.ne.s32.totalorder %s133, %s134
      %p148 = scmp.eq.s32.totalorder %s27, 1
      %p149 = por %p147, %p148
      %p151 = scmp.ne.s32.totalorder %s134, %s150
      %p152 = scmp.eq.s32.totalorder %s27, 0
      %p153 = por %p151, %p152
      %p154 = scmp.le.s32.totalorder 1, %s21
      %p155 = scmp.lt.s32.totalorder %s21, 3
      %p156 = pnand %p154, %p155
      %p157 = pneg %p156
      // Predicated region
      $region9: #{tpu_custom_call.1} parent=5 // pred_check
        _
      $region10: #{tpu_custom_call.1} parent=5 // pred_check_branch
        %159 = sbr.rel (%p156) target = $region12
      $region11: #{tpu_custom_call.1} parent=5 // pred_region
        %s160 = ssub.s32 %s21, 1
        // Predicated region
        $region13: #{tpu_custom_call.1} parent=11 // pred_check
          %p161 = pneg %p68
        $region14: #{tpu_custom_call.1} parent=11 // pred_check_branch
          %163 = sbr.rel (%p161) target = $region16
        $region15: #{tpu_custom_call.1} parent=11 // pred_region
          %165 = vsyncadd [#allocation6], 0
          %s166 = sshll.u32 %s1, 4
          %s167 = int_to_ptr.hbm [resolvable:$true] %s166
          %s168 = sshll.u32 [#allocation5], 4
          %s169 = int_to_ptr.vmem [resolvable:$true] %s168
          %174 = dma.hbm_to_vmem [thread:$0]  %s167, 960, %s169, [#allocation6], 64, 64, 4
        $region16: #{tpu_custom_call.1} parent=11 // pred_fallthru
          _
      $region12: #{tpu_custom_call.1} parent=5 // pred_fallthru
        _
      %p175 = scmp.lt.s32.totalorder %s21, 2
      // Predicated region
      $region17: #{tpu_custom_call.1} parent=5 // pred_check
        %p176 = pneg %p175
      $region18: #{tpu_custom_call.1} parent=5 // pred_check_branch
        %178 = sbr.rel (%p176) target = $region20
      $region19: #{tpu_custom_call.1} parent=5 // pred_region
        // Predicated region
        $region21: #{tpu_custom_call.1} parent=19 // pred_check
          %p179 = pneg %p41
        $region22: #{tpu_custom_call.1} parent=19 // pred_check_branch
          %181 = sbr.rel (%p179) target = $region24
        $region23: #{tpu_custom_call.1} parent=19 // pred_region
          %s182 = sand.u32 %s31, 1
          %s183 = scalar_lea.sflag [#allocation3], %s182
          %s184 = sand.u32 %s31, 1
          %s185 = smul.addr %s184, 160
          %s186 = scalar_lea.vmem [#allocation2], %s185
          %188 = vsyncadd %s183, 0
          %s189 = smul.addr %s21, 40
          %s190 = smul.addr %s189, 4
          %s191 = scalar_lea.hbm %s0, %s190
          %s192 = sshll.u32 %s191, 4
          %s193 = int_to_ptr.hbm [resolvable:$true] %s192
          %s194 = sshll.u32 %s186, 4
          %s195 = int_to_ptr.vmem [resolvable:$true] %s194
          %200 = dma.hbm_to_vmem [thread:$0]  %s193, 2560, %s195, %s183, 64, 64, 4
        $region24: #{tpu_custom_call.1} parent=19 // pred_fallthru
          _
      $region20: #{tpu_custom_call.1} parent=5 // pred_fallthru
        _
      %p201 = scmp.le.s32.totalorder 1, %s21
      %p202 = scmp.lt.s32.totalorder %s21, 3
      %p203 = pnand %p201, %p202
      %p204 = pneg %p203
      // Predicated region
      $region25: #{tpu_custom_call.1} parent=5 // pred_check
        _
      $region26: #{tpu_custom_call.1} parent=5 // pred_check_branch
        %206 = sbr.rel (%p203) target = $region28
      $region27: #{tpu_custom_call.1} parent=5 // pred_region
        %s207 = ssub.s32 %s21, 1
        %s208 = sand.u32 %s34, 1
        %s209 = scalar_lea.sflag [#allocation3], %s208
        %s210 = sand.u32 %s34, 1
        %s211 = smul.addr %s210, 160
        %s212 = scalar_lea.vmem [#allocation2], %s211
        // Predicated region
        $region29: #{tpu_custom_call.1} parent=27 // pred_check
          %p213 = pneg %p47
        $region30: #{tpu_custom_call.1} parent=27 // pred_check_branch
          %215 = sbr.rel (%p213) target = $region32
        $region31: #{tpu_custom_call.1} parent=27 // pred_region
          %217 = dma.done %s209, 2560
        $region32: #{tpu_custom_call.1} parent=27 // pred_fallthru
          _
        // Predicated region
        $region33: #{tpu_custom_call.1} parent=27 // pred_check
          %p218 = pneg %p68
        $region34: #{tpu_custom_call.1} parent=27 // pred_check_branch
          %220 = sbr.rel (%p218) target = $region36
        $region35: #{tpu_custom_call.1} parent=27 // pred_region
          %222 = dma.done [#allocation6], 960
        $region36: #{tpu_custom_call.1} parent=27 // pred_fallthru
          _
        %s223 = sand.u32 %s34, 1
        %s224 = scalar_lea.sflag [#allocation3], %s223
        %s225 = sand.u32 %s34, 1
        %s226 = smul.addr %s225, 160
        %s227 = scalar_lea.vmem [#allocation2], %s226
        %p228 = pneg %p47
        %p229 = pneg %p44
        %p230 = pneg %p68
        %p231 = pneg %p65
        %p232 = pneg %p94
        %p233 = pneg %p91
        %s234 = sand.u32 %s81, 1
        %s235 = scalar_lea.sflag [#allocation4], %s234
        %s236 = sand.u32 %s81, 1
        %s237 = smul.addr %s236, 128
        %s238 = scalar_lea.vmem [#allocation7], %s237
        %p239 = pneg %p120
        %p240 = pneg %p117
        %s241 = sand.u32 %s26, 1
        %s242 = scalar_lea.sflag [#allocation9], %s241
        %s243 = sand.u32 %s107, 1
        %s244 = scalar_lea.vmem [#allocation8], %s243
        %p245 = pneg %p146
        %p246 = pneg %p143
        %s247 = sand.u32 %s26, 1
        %s248 = scalar_lea.sflag [#allocation9], %s247
        %s249 = sand.u32 %s133, 1
        %s250 = scalar_lea.vmem [#allocation10], %s249
        loop: start=0, step=1, limit=16
        $region37: #{tpu_custom_call.1} parent=27 // loop_pre_header
          _
        $region38: #{tpu_custom_call.1} parent=27 // loop_header
          %s253 = sphi 0, %s257
          %p254 = scmp.ge.s32.totalorder %s253, 16
          %v258 = vphi 0.0, %v499
          %v259 = vphi 0.0, %v509
        $region39: #{tpu_custom_call.1} parent=27 // loop_header_branch
          %256 = sbr.rel (%p254) target = $region43
        $region40: #{tpu_custom_call.1} parent=27 // loop_body
          %s260 = smul.u32 %s253, 2
          %s261 = smul.addr %s260, 4
          %s262 = scalar_lea.vmem %s212, %s261 [#allocation2]
          %v263 = vld [vmem:[%s262] sm:$0xf]
          %v264 = vld [vmem:[%s262 + $0x4] sm:$0xf]
          %v265 = vld [vmem:[#allocation5] sm:$0xf]
          %v266 = vld [vmem:[#allocation5 + $0x4] sm:$0xf]
          %v267 = vld [vmem:[#allocation5 + $0x8] sm:$0x3]
          %s268 = sadd.s32 %s253, 1
          %s269 = smul.u32 %s268, 2
          %s270 = smul.addr %s269, 4
          %s271 = scalar_lea.vmem %s212, %s270 [#allocation2]
          %v272 = vld [vmem:[%s271] sm:$0xf]
          %v273 = vld [vmem:[%s271 + $0x4] sm:$0xf]
          %s274 = scalar_lea.vmem [#allocation5], 12
          %v275 = vld [vmem:[%s274] sm:$0xf]
          %v276 = vld [vmem:[%s274 + $0x4] sm:$0xf]
          %v277 = vld [vmem:[%s274 + $0x8] sm:$0x3]
          %v280 = vunpack.c.l.b16 %v272
          %v281 = vunpack.c.l.b16 %v273
          %v282 = vpack.c.b16 %v281, %v280
          %v286 = vunpack.c.l.b16 %v275
          %v287 = vunpack.c.l.b16 %v276
          %v288 = vunpack.c.l.b16 %v277
          %v289 = vpack.c.b16 %v287, %v286
          %v290 = vpack.c.b16 %v288, %v288
          %vm292 = vcmask 162816
          %v294 = vsel %vm292, %v282, 0
          %vm296 = vcmask 1041408
          %v298 = vsel %vm296, %v290, 0
          %300 = vmatpush.bf16.msra.mxu0 0
          %301 = vmatpush.bf16.msra.mxu0 0
          %302 = vmatpush.bf16.msra.mxu0 0
          %303 = vmatpush.bf16.msra.mxu0 0
          %304 = vmatpush.bf16.msra.mxu0 0
          %305 = vmatpush.bf16.msra.mxu0 0
          %306 = vmatpush.bf16.msra.mxu0 %v298
          %307 = vmatpush.bf16.msra.mxu0 %v289
          %308 = vmatmul.bf16.gmra.mxu0 %v294
          %v309 = vpop.f32.mrf.mxu0
          %v310 = vadd.f32 0.0, %v309
          %v311 = vpop.f32.mrf.mxu0
          %v312 = vadd.f32 0.0, %v311
          %313 = vdwg.mxu0
          %v316 = vunpack.c.l.b16 %v263
          %v317 = vunpack.c.l.b16 %v264
          %v318 = vpack.c.b16 %v317, %v316
          %v322 = vunpack.c.l.b16 %v265
          %v323 = vunpack.c.l.b16 %v266
          %v324 = vunpack.c.l.b16 %v267
          %v325 = vpack.c.b16 %v323, %v322
          %v326 = vpack.c.b16 %v324, %v324
          %v329 = vsel %vm292, %v318, 0
          %v332 = vsel %vm296, %v326, 0
          %334 = vmatpush.bf16.msra.mxu0 0
          %335 = vmatpush.bf16.msra.mxu0 0
          %336 = vmatpush.bf16.msra.mxu0 0
          %337 = vmatpush.bf16.msra.mxu0 0
          %338 = vmatpush.bf16.msra.mxu0 0
          %339 = vmatpush.bf16.msra.mxu0 0
          %340 = vmatpush.bf16.msra.mxu0 %v332
          %341 = vmatpush.bf16.msra.mxu0 %v325
          %342 = vmatmul.bf16.gmra.mxu0 %v329
          %v343 = vpop.f32.mrf.mxu0
          %v344 = vadd.f32 %v310, %v343
          %v345 = vpop.f32.mrf.mxu0
          %v346 = vadd.f32 %v312, %v345
          %347 = vdwg.mxu0
          %s348 = sadd.s32 %s253, 2
          %s349 = smul.u32 %s348, 2
          %s350 = smul.addr %s349, 4
          %s351 = scalar_lea.vmem %s212, %s350 [#allocation2]
          %v352 = vld [vmem:[%s351] sm:$0xf]
          %v353 = vld [vmem:[%s351 + $0x4] sm:$0xf]
          %s354 = scalar_lea.vmem [#allocation5], 24
          %v355 = vld [vmem:[%s354] sm:$0xf]
          %v356 = vld [vmem:[%s354 + $0x4] sm:$0xf]
          %v357 = vld [vmem:[%s354 + $0x8] sm:$0x3]
          %v360 = vunpack.c.l.b16 %v352
          %v361 = vunpack.c.l.b16 %v353
          %v362 = vpack.c.b16 %v361, %v360
          %v366 = vunpack.c.l.b16 %v355
          %v367 = vunpack.c.l.b16 %v356
          %v368 = vunpack.c.l.b16 %v357
          %v369 = vpack.c.b16 %v367, %v366
          %v370 = vpack.c.b16 %v368, %v368
          %v373 = vsel %vm292, %v362, 0
          %v376 = vsel %vm296, %v370, 0
          %378 = vmatpush.bf16.msra.mxu0 0
          %379 = vmatpush.bf16.msra.mxu0 0
          %380 = vmatpush.bf16.msra.mxu0 0
          %381 = vmatpush.bf16.msra.mxu0 0
          %382 = vmatpush.bf16.msra.mxu0 0
          %383 = vmatpush.bf16.msra.mxu0 0
          %384 = vmatpush.bf16.msra.mxu0 %v376
          %385 = vmatpush.bf16.msra.mxu0 %v369
          %386 = vmatmul.bf16.gmra.mxu0 %v373
          %v387 = vpop.f32.mrf.mxu0
          %v388 = vadd.f32 0.0, %v387
          %v389 = vpop.f32.mrf.mxu0
          %v390 = vadd.f32 0.0, %v389
          %391 = vdwg.mxu0
          %v392 = vadd.f32 %v344, %v388
          %v393 = vadd.f32 %v346, %v390
          %s394 = sadd.s32 %s253, 3
          %s395 = smul.u32 %s394, 2
          %s396 = smul.addr %s395, 4
          %s397 = scalar_lea.vmem %s212, %s396 [#allocation2]
          %v398 = vld [vmem:[%s397] sm:$0xf]
          %v399 = vld [vmem:[%s397 + $0x4] sm:$0xf]
          %s400 = scalar_lea.vmem [#allocation5], 36
          %v401 = vld [vmem:[%s400] sm:$0xf]
          %v402 = vld [vmem:[%s400 + $0x4] sm:$0xf]
          %v403 = vld [vmem:[%s400 + $0x8] sm:$0x3]
          %v406 = vunpack.c.l.b16 %v398
          %v407 = vunpack.c.l.b16 %v399
          %v408 = vpack.c.b16 %v407, %v406
          %v412 = vunpack.c.l.b16 %v401
          %v413 = vunpack.c.l.b16 %v402
          %v414 = vunpack.c.l.b16 %v403
          %v415 = vpack.c.b16 %v413, %v412
          %v416 = vpack.c.b16 %v414, %v414
          %v419 = vsel %vm292, %v408, 0
          %v422 = vsel %vm296, %v416, 0
          %424 = vmatpush.bf16.msra.mxu0 0
          %425 = vmatpush.bf16.msra.mxu0 0
          %426 = vmatpush.bf16.msra.mxu0 0
          %427 = vmatpush.bf16.msra.mxu0 0
          %428 = vmatpush.bf16.msra.mxu0 0
          %429 = vmatpush.bf16.msra.mxu0 0
          %430 = vmatpush.bf16.msra.mxu0 %v422
          %431 = vmatpush.bf16.msra.mxu0 %v415
          %432 = vmatmul.bf16.gmra.mxu0 %v419
          %v433 = vpop.f32.mrf.mxu0
          %v434 = vadd.f32 0.0, %v433
          %v435 = vpop.f32.mrf.mxu0
          %v436 = vadd.f32 0.0, %v435
          %437 = vdwg.mxu0
          %v438 = vadd.f32 %v392, %v434
          %v439 = vadd.f32 %v393, %v436
          %s440 = sadd.s32 %s253, 4
          %s441 = smul.u32 %s440, 2
          %s442 = smul.addr %s441, 4
          %s443 = scalar_lea.vmem %s212, %s442 [#allocation2]
          %v444 = vld [vmem:[%s443] sm:$0xf]
          %v445 = vld [vmem:[%s443 + $0x4] sm:$0xf]
          %s446 = scalar_lea.vmem [#allocation5], 48
          %v447 = vld [vmem:[%s446] sm:$0xf]
          %v448 = vld [vmem:[%s446 + $0x4] sm:$0xf]
          %v449 = vld [vmem:[%s446 + $0x8] sm:$0x3]
          %v452 = vunpack.c.l.b16 %v444
          %v453 = vunpack.c.l.b16 %v445
          %v454 = vpack.c.b16 %v453, %v452
          %v458 = vunpack.c.l.b16 %v447
          %v459 = vunpack.c.l.b16 %v448
          %v460 = vunpack.c.l.b16 %v449
          %v461 = vpack.c.b16 %v459, %v458
          %v462 = vpack.c.b16 %v460, %v460
          %v465 = vsel %vm292, %v454, 0
          %v468 = vsel %vm296, %v462, 0
          %470 = vmatpush.bf16.msra.mxu0 0
          %471 = vmatpush.bf16.msra.mxu0 0
          %472 = vmatpush.bf16.msra.mxu0 0
          %473 = vmatpush.bf16.msra.mxu0 0
          %474 = vmatpush.bf16.msra.mxu0 0
          %475 = vmatpush.bf16.msra.mxu0 0
          %476 = vmatpush.bf16.msra.mxu0 %v468
          %477 = vmatpush.bf16.msra.mxu0 %v461
          %478 = vmatmul.bf16.gmra.mxu0 %v465
          %v479 = vpop.f32.mrf.mxu0
          %v480 = vadd.f32 0.0, %v479
          %v481 = vpop.f32.mrf.mxu0
          %v482 = vadd.f32 0.0, %v481
          %483 = vdwg.mxu0
          %v484 = vadd.f32 %v438, %v480
          %v485 = vadd.f32 %v439, %v482
          %v486 = vpack.c.bf16 %v484, %v484
          %v487 = vpack.c.bf16 %v485, %v485
          %s488 = smul.addr %s260, 4
          %s489 = scalar_lea.vmem %s238, %s488 [#allocation7]
          %490 = vst [vmem:[%s489] sm:$0xf] %v486
          %491 = vst [vmem:[%s489 + $0x4] sm:$0xf] %v487
          %v492 = vadd.f32 %v484, %v485
          %v493 = vrot.slane %v492, 4
          %v494 = vadd.f32 %v492, %v493
          %v495 = vrot.slane %v494, 2
          %v496 = vadd.f32 %v494, %v495
          %v497 = vrot.slane %v496, 1
          %v498 = vadd.f32 %v496, %v497
          %v499 = vadd.f32 %v258, %v498
          %v500 = vmul.f32 %v484, %v484
          %v501 = vmul.f32 %v485, %v485
          %v502 = vadd.f32 %v500, %v501
          %v503 = vrot.slane %v502, 4
          %v504 = vadd.f32 %v502, %v503
          %v505 = vrot.slane %v504, 2
          %v506 = vadd.f32 %v504, %v505
          %v507 = vrot.slane %v506, 1
          %v508 = vadd.f32 %v506, %v507
          %v509 = vadd.f32 %v259, %v508
        $region41: #{tpu_custom_call.1} parent=27 // loop_footer
          %s257 = sadd.s32 1, %s253
        $region42: #{tpu_custom_call.1} parent=27 // loop_footer_branch
          %252 = sbr.rel target = $region38
        $region43: #{tpu_custom_call.1} parent=27 // loop_exit
          _
        %510 = vst [vmem:[%s244] sm:$0x1] %v258
        %511 = vst [vmem:[%s250] sm:$0x1] %v259
        %s512 = sand.u32 %s81, 1
        %s513 = scalar_lea.sflag [#allocation4], %s512
        %s514 = sand.u32 %s81, 1
        %s515 = smul.addr %s514, 128
        %s516 = scalar_lea.vmem [#allocation7], %s515
        %s517 = sand.u32 %s26, 1
        %s518 = scalar_lea.sflag [#allocation9], %s517
        %s519 = sand.u32 %s107, 1
        %s520 = scalar_lea.vmem [#allocation8], %s519
        %s521 = sand.u32 %s26, 1
        %s522 = scalar_lea.sflag [#allocation9], %s521
        %s523 = sand.u32 %s133, 1
        %s524 = scalar_lea.vmem [#allocation10], %s523
        // Predicated region
        $region44: #{tpu_custom_call.1} parent=27 // pred_check
          %p525 = pneg %p91
        $region45: #{tpu_custom_call.1} parent=27 // pred_check_branch
          %527 = sbr.rel (%p525) target = $region47
        $region46: #{tpu_custom_call.1} parent=27 // pred_region
          %529 = vsyncadd %s513, 0
          %s530 = smul.addr %s26, 32
          %s531 = smul.addr %s530, 4
          %s532 = scalar_lea.hbm %s2, %s531
          %s533 = sshll.u32 %s516, 4
          %s534 = int_to_ptr.vmem [resolvable:$true] %s533
          %s535 = sshll.u32 %s532, 4
          %s536 = int_to_ptr.hbm [resolvable:$true] %s535
          %541 = dma.vmem_to_hbm [thread:$0]  %s534, 2048, %s536, %s513, 64, 64, 4
        $region47: #{tpu_custom_call.1} parent=27 // pred_fallthru
          _
        // Predicated region
        $region48: #{tpu_custom_call.1} parent=27 // pred_check
          %p542 = pneg %p117
        $region49: #{tpu_custom_call.1} parent=27 // pred_check_branch
          %544 = sbr.rel (%p542) target = $region51
        $region50: #{tpu_custom_call.1} parent=27 // pred_region
          %546 = vsyncadd %s518, 0
          %s547 = scalar_lea.hbm %s3, %s26
          %s549 = sshll.u32 %s520, 4
          %s550 = int_to_ptr.vmem [resolvable:$true] %s549
          %s551 = sshll.u32 %s547, 4
          %s552 = int_to_ptr.hbm [resolvable:$true] %s551
          %554 = dma.vmem_to_hbm [thread:$0]  %s550, 16, %s552, %s518
        $region51: #{tpu_custom_call.1} parent=27 // pred_fallthru
          _
        // Predicated region
        $region52: #{tpu_custom_call.1} parent=27 // pred_check
          %p555 = pneg %p143
        $region53: #{tpu_custom_call.1} parent=27 // pred_check_branch
          %557 = sbr.rel (%p555) target = $region55
        $region54: #{tpu_custom_call.1} parent=27 // pred_region
          %559 = vsyncadd %s522, 0
          %s560 = scalar_lea.hbm %s4, %s26
          %s562 = sshll.u32 %s524, 4
          %s563 = int_to_ptr.vmem [resolvable:$true] %s562
          %s564 = sshll.u32 %s560, 4
          %s565 = int_to_ptr.hbm [resolvable:$true] %s564
          %567 = dma.vmem_to_hbm [thread:$0]  %s563, 16, %s565, %s522
        $region55: #{tpu_custom_call.1} parent=27 // pred_fallthru
          _
      $region28: #{tpu_custom_call.1} parent=5 // pred_fallthru
        _
      %p568 = scmp.le.s32.totalorder 2, %s21
      // Predicated region
      $region56: #{tpu_custom_call.1} parent=5 // pred_check
        %p569 = pneg %p568
      $region57: #{tpu_custom_call.1} parent=5 // pred_check_branch
        %571 = sbr.rel (%p569) target = $region59
      $region58: #{tpu_custom_call.1} parent=5 // pred_region
        %s572 = ssub.s32 %s21, 2
        // Predicated region
        $region60: #{tpu_custom_call.1} parent=58 // pred_check
          %p573 = pneg %p97
        $region61: #{tpu_custom_call.1} parent=58 // pred_check_branch
          %575 = sbr.rel (%p573) target = $region63
        $region62: #{tpu_custom_call.1} parent=58 // pred_region
          %s576 = sand.u32 %s82, 1
          %s577 = scalar_lea.sflag [#allocation4], %s576
          %s578 = sand.u32 %s82, 1
          %s579 = smul.addr %s578, 128
          %s580 = scalar_lea.vmem [#allocation7], %s579
          %582 = dma.done %s577, 2048
        $region63: #{tpu_custom_call.1} parent=58 // pred_fallthru
          _
        // Predicated region
        $region64: #{tpu_custom_call.1} parent=58 // pred_check
          %p583 = pneg %p123
        $region65: #{tpu_custom_call.1} parent=58 // pred_check_branch
          %585 = sbr.rel (%p583) target = $region67
        $region66: #{tpu_custom_call.1} parent=58 // pred_region
          %s586 = sand.u32 %s27, 1
          %s587 = scalar_lea.sflag [#allocation9], %s586
          %s588 = sand.u32 %s108, 1
          %s589 = scalar_lea.vmem [#allocation8], %s588
          %591 = dma.done %s587, 16
        $region67: #{tpu_custom_call.1} parent=58 // pred_fallthru
          _
        // Predicated region
        $region68: #{tpu_custom_call.1} parent=58 // pred_check
          %p592 = pneg %p149
        $region69: #{tpu_custom_call.1} parent=58 // pred_check_branch
          %594 = sbr.rel (%p592) target = $region71
        $region70: #{tpu_custom_call.1} parent=58 // pred_region
          %s595 = sand.u32 %s27, 1
          %s596 = scalar_lea.sflag [#allocation9], %s595
          %s597 = sand.u32 %s134, 1
          %s598 = scalar_lea.vmem [#allocation10], %s597
          %600 = dma.done %s596, 16
        $region71: #{tpu_custom_call.1} parent=58 // pred_fallthru
          _
      $region59: #{tpu_custom_call.1} parent=5 // pred_fallthru
        _
    $region6: #{tpu_custom_call.1} parent=1 // loop_footer
      %s25 = sadd.s32 1, %s21
    $region7: #{tpu_custom_call.1} parent=1 // loop_footer_branch
      %20 = sbr.rel target = $region3
    $region8: #{tpu_custom_call.1} parent=1 // loop_exit
      _
    %601 = vsyncpa [#allocation3], 1
    %s602 = scalar_lea.sflag [#allocation3], 1
    %603 = vsyncpa %s602, 1
    %604 = vsyncpa [#allocation6], 1
    %605 = vsyncpa [#allocation4], 1
    %s606 = scalar_lea.sflag [#allocation4], 1
    %607 = vsyncpa %s606, 1
    %608 = vsyncpa [#allocation9], 1
    %s609 = scalar_lea.sflag [#allocation9], 1
    %610 = vsyncpa %s609, 1

</llo_original>
